<compile_context>
chip_gen: v7x
topology: tpu7x:2x2x1
jax: 0.10.0
libtpu: 0.0.40
codegen_flags: <defaults>
</compile_context>

<pallas_src>
import jax
import jax.numpy as jnp
from jax.experimental import pallas as pl
from jax.experimental.pallas import tpu as pltpu

# Small synthetic problem sizes consistent with the module:
B = 4           # batch of independent graphs (grid axis, "parallel")
N = 64          # number of graph nodes per graph
F_IN = 32       # dataset.num_features
HID = 16        # hidden dim of conv1
C = 8           # dataset.num_classes
C_PAD = 128     # class dim padded to a full 128-lane vreg for a lane-dense store


def gcn_forward_kernel(x_ref, adj_ref, w1_ref, b1_ref, w2_ref, b2_ref, out_ref):
    # One grid step == one graph of the batch.
    x = x_ref[...]        # (N, F_IN)  bf16
    adj = adj_ref[...]    # (N, N)     bf16 (normalized Â, reused by both convs)

    # conv1: Â @ (X @ W1) + b1, then ReLU  (contract to the narrow HID dim first)
    xw = jnp.dot(x, w1_ref[...], preferred_element_type=jnp.float32)
    h = jnp.dot(adj, xw.astype(jnp.bfloat16), preferred_element_type=jnp.float32)
    h = jnp.maximum(h + b1_ref[...], 0.0)                 # f32 epilogue

    # F.dropout is identity in eval mode.
    # TODO(synk): training-mode dropout would need pltpu.prng_seed + prng_random_bits.

    # conv2: Â @ (H @ W2p) + b2p  (classes padded to 128 lanes; pad cols of W2p are 0,
    # pad entries of b2p are -1e30 so they vanish under softmax)
    hw = jnp.dot(h.astype(jnp.bfloat16), w2_ref[...], preferred_element_type=jnp.float32)
    z = jnp.dot(adj, hw.astype(jnp.bfloat16), preferred_element_type=jnp.float32)
    z = z + b2_ref[...]                                   # f32

    # numerically-stable log_softmax over the (padded) class dim, all f32
    m = jnp.max(z, axis=1, keepdims=True)
    lse = m + jnp.log(jnp.sum(jnp.exp(z - m), axis=1, keepdims=True))
    out_ref[...] = z - lse                                 # (N, 128) lane-dense store


def gcn_net_forward(x, adj, w1, b1, w2, b2):
    """x: (B,N,F_IN) f32, adj: (B,N,N) f32 normalized, w1:(F_IN,HID), b1:(HID,),
    w2:(HID,C), b2:(C,). Returns log-probabilities (B, N, C) f32."""
    b_, n_, f_ = x.shape
    hid = w1.shape[1]
    c = w2.shape[1]

    # bf16 MXU operands (halves adj/x DMA bytes, 2x MXU throughput); f32 accumulation.
    x_bf = x.astype(jnp.bfloat16)
    adj_bf = adj.astype(jnp.bfloat16)
    w1_bf = w1.astype(jnp.bfloat16)

    # Pad the class dim to 128 lanes: zero weight columns, -1e30 bias for padding
    # classes -> exp() of padded logits is exactly 0, real log_softmax unchanged.
    w2_pad = jnp.zeros((hid, C_PAD), jnp.float32).at[:, :c].set(w2).astype(jnp.bfloat16)
    b2_pad = jnp.full((1, C_PAD), -1e30, jnp.float32).at[0, :c].set(b2.reshape(-1))
    b1_2d = b1.reshape(1, hid).astype(jnp.float32)

    out_pad = pl.pallas_call(
        gcn_forward_kernel,
        out_shape=jax.ShapeDtypeStruct((b_, n_, C_PAD), jnp.float32),
        grid=(b_,),
        in_specs=[
            pl.BlockSpec((None, n_, f_), lambda b: (b, 0, 0)),      # x     (per-graph)
            pl.BlockSpec((None, n_, n_), lambda b: (b, 0, 0)),      # adj   (per-graph)
            pl.BlockSpec((f_, hid), lambda b: (0, 0)),              # w1    (resident)
            pl.BlockSpec((1, hid), lambda b: (0, 0)),               # b1    (resident)
            pl.BlockSpec((hid, C_PAD), lambda b: (0, 0)),           # w2pad (resident)
            pl.BlockSpec((1, C_PAD), lambda b: (0, 0)),             # b2pad (resident)
        ],
        out_specs=pl.BlockSpec((None, n_, C_PAD), lambda b: (b, 0, 0)),
        compiler_params=pltpu.CompilerParams(
            dimension_semantics=("parallel",),        # megacore / v7x 2-TC sharding
            vmem_limit_bytes=48 * 1024 * 1024,        # headroom; < v7x 64 MiB physical
        ),
    )(x_bf, adj_bf, w1_bf, b1_2d, w2_pad, b2_pad)

    return out_pad[..., :c]   # drop padded classes (wrapper-side slice)


def build_normalized_adj(edge_index, num_nodes):
    """GCN normalization: Â = D^{-1/2} (A + I) D^{-1/2}, unit edge weights,
    exactly one self loop per node (PyG add_self_loops semantics)."""
    src, dst = edge_index[0], edge_index[1]
    a = jnp.zeros((num_nodes, num_nodes), jnp.float32)
    a = a.at[src, dst].set(1.0)
    a = jnp.maximum(a, a.T)                               # undirected
    eye = jnp.eye(num_nodes, dtype=jnp.float32)
    a = jnp.where(eye > 0, 0.0, a) + eye                  # exactly one self loop
    deg = jnp.sum(a, axis=1)
    d_inv_sqrt = jnp.where(deg > 0, 1.0 / jnp.sqrt(deg), 0.0)
    return d_inv_sqrt[:, None] * a * d_inv_sqrt[None, :]


if __name__ == "__main__":
    key = jax.random.PRNGKey(0)

    xs, adjs = [], []
    for _g in range(B):
        key, k_x, k_e = jax.random.split(key, 3)
        # Node features (NormalizeFeatures: row-normalize so each row sums to 1).
        x_raw = jax.random.uniform(k_x, (N, F_IN), jnp.float32)
        row_sum = jnp.sum(x_raw, axis=1, keepdims=True)
        xs.append(x_raw / jnp.where(row_sum > 0, row_sum, 1.0))
        # Deterministic random sparse graph: ring + random edges.
        ring_src = jnp.arange(N, dtype=jnp.int32)
        ring_dst = (ring_src + 1) % N
        rand_edges = jax.random.randint(k_e, (2, 128), 0, N, dtype=jnp.int32)
        edge_index = jnp.concatenate(
            [jnp.stack([ring_src, ring_dst]), rand_edges], axis=1)
        adjs.append(build_normalized_adj(edge_index, N))

    x = jnp.stack(xs)        # (B, N, F_IN)
    adj = jnp.stack(adjs)    # (B, N, N)

    # Deterministic Glorot-uniform parameters (GCNConv default: glorot W, zero bias).
    key, k_w1, k_w2 = jax.random.split(key, 3)
    lim1 = jnp.sqrt(6.0 / (F_IN + HID))
    w1 = jax.random.uniform(k_w1, (F_IN, HID), jnp.float32, -lim1, lim1)
    b1 = jnp.zeros((HID,), jnp.float32)
    lim2 = jnp.sqrt(6.0 / (HID + C))
    w2 = jax.random.uniform(k_w2, (HID, C), jnp.float32, -lim2, lim2)
    b2 = jnp.zeros((C,), jnp.float32)

    out = gcn_net_forward(x, adj, w1, b1, w2, b2)
    jax.block_until_ready(out)

    # Pure-JAX f32 reference for correctness.
    def ref_one(xg, ag):
        h = jnp.maximum(ag @ (xg @ w1) + b1[None, :], 0.0)
        z = ag @ (h @ w2) + b2[None, :]
        return jax.nn.log_softmax(z, axis=-1)

    ref = jax.vmap(ref_one)(x, adj)

    assert out.shape == (B, N, C)
    # log_softmax rows should exp-sum to 1 (padded classes contribute exactly 0)
    assert bool(jnp.allclose(jnp.sum(jnp.exp(out), axis=-1), 1.0, atol=2e-3))
    # close to the f32 reference despite bf16 matmul operands
    assert float(jnp.max(jnp.abs(out - ref))) < 5e-2
    print("KERNEL_OK")
</pallas_src>

<mosaic_0001>
module attributes {stable_mosaic.version = 11 : i64} {
  func.func @gcn_forward_kernel(%arg0: i32, %arg1: memref<1x64x32xbf16, #tpu.memory_space<vmem>>, %arg2: memref<1x64x64xbf16, #tpu.memory_space<vmem>>, %arg3: memref<32x16xbf16, #tpu.memory_space<vmem>>, %arg4: memref<1x16xf32, #tpu.memory_space<vmem>>, %arg5: memref<16x128xbf16, #tpu.memory_space<vmem>>, %arg6: memref<1x128xf32, #tpu.memory_space<vmem>>, %arg7: memref<1x64x128xf32, #tpu.memory_space<vmem>>) attributes {dimension_semantics = [#tpu.dimension_semantics<parallel>], iteration_bounds = array<i64: 4>, scalar_prefetch = 0 : i64, scratch_operands = 0 : i64, tpu.core_type = #tpu.core_type<tc>, window_params = [{transform_indices = @transform_0, window_bounds = array<i64: 1, 64, 32>}, {transform_indices = @transform_1, window_bounds = array<i64: 1, 64, 64>}, {pipeline_mode = #tpu.pipeline_mode<synchronous>, transform_indices = @transform_2, window_bounds = array<i64: 32, 16>}, {pipeline_mode = #tpu.pipeline_mode<synchronous>, transform_indices = @transform_3, window_bounds = array<i64: 1, 16>}, {pipeline_mode = #tpu.pipeline_mode<synchronous>, transform_indices = @transform_4, window_bounds = array<i64: 16, 128>}, {pipeline_mode = #tpu.pipeline_mode<synchronous>, transform_indices = @transform_5, window_bounds = array<i64: 1, 128>}, {transform_indices = @transform_6, window_bounds = array<i64: 1, 64, 128>}]} {
    %c0 = arith.constant 0 : index
    %c0_0 = arith.constant 0 : index
    %c0_1 = arith.constant 0 : index
    %0 = vector.load %arg1[%c0, %c0_0, %c0_1] : memref<1x64x32xbf16, #tpu.memory_space<vmem>>, vector<1x64x32xbf16>
    %1 = vector.shape_cast %0 : vector<1x64x32xbf16> to vector<64x32xbf16>
    %c0_2 = arith.constant 0 : index
    %c0_3 = arith.constant 0 : index
    %c0_4 = arith.constant 0 : index
    %2 = vector.load %arg2[%c0_2, %c0_3, %c0_4] : memref<1x64x64xbf16, #tpu.memory_space<vmem>>, vector<1x64x64xbf16>
    %3 = vector.shape_cast %2 : vector<1x64x64xbf16> to vector<64x64xbf16>
    %c0_5 = arith.constant 0 : index
    %c0_6 = arith.constant 0 : index
    %4 = vector.load %arg3[%c0_5, %c0_6] : memref<32x16xbf16, #tpu.memory_space<vmem>>, vector<32x16xbf16>
    %cst = arith.constant dense<0.000000e+00> : vector<64x16xf32>
    %5 = tpu.matmul %1, %4, %cst {dimension_numbers = #tpu.dot_dimension_numbers<[1], [0], [0], [1], [0, 0, 1, 1], [], []>} : vector<64x32xbf16>, vector<32x16xbf16>, vector<64x16xf32> -> vector<64x16xf32>
    %6 = arith.truncf %5 : vector<64x16xf32> to vector<64x16xbf16>
    %cst_7 = arith.constant dense<0.000000e+00> : vector<64x16xf32>
    %7 = tpu.matmul %3, %6, %cst_7 {dimension_numbers = #tpu.dot_dimension_numbers<[1], [0], [0], [1], [0, 0, 1, 1], [], []>} : vector<64x64xbf16>, vector<64x16xbf16>, vector<64x16xf32> -> vector<64x16xf32>
    %c0_8 = arith.constant 0 : index
    %c0_9 = arith.constant 0 : index
    %8 = vector.load %arg4[%c0_8, %c0_9] : memref<1x16xf32, #tpu.memory_space<vmem>>, vector<1x16xf32>
    %9 = vector.broadcast %8 : vector<1x16xf32> to vector<64x16xf32>
    %10 = arith.addf %7, %9 : vector<64x16xf32>
    %cst_10 = arith.constant 0.000000e+00 : f32
    %11 = vector.broadcast %cst_10 : f32 to vector<64x16xf32>
    %12 = arith.maximumf %10, %11 : vector<64x16xf32>
    %13 = arith.truncf %12 : vector<64x16xf32> to vector<64x16xbf16>
    %c0_11 = arith.constant 0 : index
    %c0_12 = arith.constant 0 : index
    %14 = vector.load %arg5[%c0_11, %c0_12] : memref<16x128xbf16, #tpu.memory_space<vmem>>, vector<16x128xbf16>
    %cst_13 = arith.constant dense<0.000000e+00> : vector<64x128xf32>
    %15 = tpu.matmul %13, %14, %cst_13 {dimension_numbers = #tpu.dot_dimension_numbers<[1], [0], [0], [1], [0, 0, 1, 1], [], []>} : vector<64x16xbf16>, vector<16x128xbf16>, vector<64x128xf32> -> vector<64x128xf32>
    %16 = arith.truncf %15 : vector<64x128xf32> to vector<64x128xbf16>
    %cst_14 = arith.constant dense<0.000000e+00> : vector<64x128xf32>
    %17 = tpu.matmul %3, %16, %cst_14 {dimension_numbers = #tpu.dot_dimension_numbers<[1], [0], [0], [1], [0, 0, 1, 1], [], []>} : vector<64x64xbf16>, vector<64x128xbf16>, vector<64x128xf32> -> vector<64x128xf32>
    %c0_15 = arith.constant 0 : index
    %c0_16 = arith.constant 0 : index
    %18 = vector.load %arg6[%c0_15, %c0_16] : memref<1x128xf32, #tpu.memory_space<vmem>>, vector<1x128xf32>
    %19 = vector.broadcast %18 : vector<1x128xf32> to vector<64x128xf32>
    %20 = arith.addf %17, %19 : vector<64x128xf32>
    %cst_17 = arith.constant dense<0xFF800000> : vector<64xf32>
    %21 = vector.multi_reduction <maximumf>, %20, %cst_17 [1] : vector<64x128xf32> to vector<64xf32>
    %22 = vector.shape_cast %21 : vector<64xf32> to vector<64x1xf32>
    %23 = vector.broadcast %22 : vector<64x1xf32> to vector<64x128xf32>
    %24 = arith.subf %20, %23 : vector<64x128xf32>
    %25 = math.exp %24 : vector<64x128xf32>
    %cst_18 = arith.constant dense<0.000000e+00> : vector<64xf32>
    %26 = vector.multi_reduction <add>, %25, %cst_18 [1] : vector<64x128xf32> to vector<64xf32>
    %27 = vector.shape_cast %26 : vector<64xf32> to vector<64x1xf32>
    %28 = math.log %27 : vector<64x1xf32>
    %29 = arith.addf %22, %28 : vector<64x1xf32>
    %30 = vector.broadcast %29 : vector<64x1xf32> to vector<64x128xf32>
    %31 = arith.subf %20, %30 : vector<64x128xf32>
    %c0_19 = arith.constant 0 : index
    %c0_20 = arith.constant 0 : index
    %c0_21 = arith.constant 0 : index
    %32 = vector.load %arg7[%c0_19, %c0_20, %c0_21] : memref<1x64x128xf32, #tpu.memory_space<vmem>>, vector<1x64x128xf32>
    %33 = vector.shape_cast %32 : vector<1x64x128xf32> to vector<64x128xf32>
    %34 = vector.shape_cast %31 : vector<64x128xf32> to vector<1x64x128xf32>
    tpu.vector_store %arg7[%c0_19, %c0_20, %c0_21], %34 {strides = array<i32>} : memref<1x64x128xf32, #tpu.memory_space<vmem>>, vector<1x64x128xf32>,
    return
  }
  func.func @transform_0(%arg0: i32) -> (i32, i32, i32) {
    %c0_i32 = arith.constant 0 : i32
    %c0_i32_0 = arith.constant 0 : i32
    %c0_i32_1 = arith.constant 0 : i32
    return %arg0, %c0_i32, %c0_i32_0 : i32, i32, i32
  }
  func.func @transform_1(%arg0: i32) -> (i32, i32, i32) {
    %c0_i32 = arith.constant 0 : i32
    %c0_i32_0 = arith.constant 0 : i32
    %c0_i32_1 = arith.constant 0 : i32
    return %arg0, %c0_i32, %c0_i32_0 : i32, i32, i32
  }
  func.func @transform_2(%arg0: i32) -> (i32, i32) {
    %c0_i32 = arith.constant 0 : i32
    %c0_i32_0 = arith.constant 0 : i32
    %c0_i32_1 = arith.constant 0 : i32
    return %c0_i32, %c0_i32_0 : i32, i32
  }
  func.func @transform_3(%arg0: i32) -> (i32, i32) {
    %c0_i32 = arith.constant 0 : i32
    %c0_i32_0 = arith.constant 0 : i32
    %c0_i32_1 = arith.constant 0 : i32
    return %c0_i32, %c0_i32_0 : i32, i32
  }
  func.func @transform_4(%arg0: i32) -> (i32, i32) {
    %c0_i32 = arith.constant 0 : i32
    %c0_i32_0 = arith.constant 0 : i32
    %c0_i32_1 = arith.constant 0 : i32
    return %c0_i32, %c0_i32_0 : i32, i32
  }
  func.func @transform_5(%arg0: i32) -> (i32, i32) {
    %c0_i32 = arith.constant 0 : i32
    %c0_i32_0 = arith.constant 0 : i32
    %c0_i32_1 = arith.constant 0 : i32
    return %c0_i32, %c0_i32_0 : i32, i32
  }
  func.func @transform_6(%arg0: i32) -> (i32, i32, i32) {
    %c0_i32 = arith.constant 0 : i32
    %c0_i32_0 = arith.constant 0 : i32
    %c0_i32_1 = arith.constant 0 : i32
    return %arg0, %c0_i32, %c0_i32_0 : i32, i32, i32
  }
}

</mosaic_0001>

<llo_original>
// kernel: tpu_custom_call.1
$region0: #{tpu_custom_call.1}
  #allocation0 [shape = 'u32[]', space=smem, size = 0x4, offset = 0x4, fixed_abs, tag = 'smem constant byte address 0x4 - core index']
  #allocation1 [shape = 'u32[144,128]{1,0:T(1,128)}', space=vmem, size = 0x12000, scoped, tag = 'internal scratch']
  %s0 = inlined_call_operand.vmem [shape: bf16[4,64,32], index: 0, kind: input, shape index: {}]
  %s1 = inlined_call_operand.vmem [shape: bf16[4,64,64], index: 1, kind: input, shape index: {}]
  %s2 = inlined_call_operand.vmem [shape: bf16[32,16], index: 2, kind: input, shape index: {}]
  %s3 = inlined_call_operand.vmem [shape: f32[1,16], index: 3, kind: input, shape index: {}]
  %s4 = inlined_call_operand.vmem [shape: bf16[16,128], index: 4, kind: input, shape index: {}]
  %s5 = inlined_call_operand.vmem [shape: f32[1,128], index: 5, kind: input, shape index: {}]
  %s6 = inlined_call_operand.hbm [shape: f32[4,64,128], index: 6, kind: output, shape index: {}]
  %s7 = sld [smem:[#allocation0]]
  $region57: #{tpu_custom_call.1} parent=0
    _
  %s9 = ssub.s32 1, %s7
  %s10 = scalar_select 0, %s9, %s7
  $region1: #{tpu_custom_call.1} parent=0
    #allocation2 [shape = 'u8[65536]{0}', space=vmem, size = 0x10000, scoped, tag = 'output window, operand 0']
    #allocation3 [shape = 's32[2]{0}', space=sflag, size = 0x8, scoped, tag = 'scoped memory for tpu_custom_call.1']
    %11 = vsyncpa [#allocation3], 0
    %s12 = scalar_lea.sflag [#allocation3], 1
    %13 = vsyncpa %s12, 0
    loop: start=0, step=1, limit=6
    $region2: #{tpu_custom_call.1} parent=1 // loop_pre_header
      _
    $region3: #{tpu_custom_call.1} parent=1 // loop_header
      %s15 = sphi 0, %s19
      %p16 = scmp.ge.s32.totalorder %s15, 6
      %s25 = sphi 0, %s27
      %s28 = sphi 0, %s25
      %s29 = sphi 0, %s28
      %s45 = sphi 0, %s29
      %s51 = sphi 0, %s53
      %s54 = sphi 0, %s51
      %s55 = sphi 0, %s54
      %s71 = sphi 0, %s55
      %s75 = sphi 0, %s75
      %s77 = sphi 0, %s75
      %s78 = sphi 0, %s77
      %s92 = sphi 0, %s78
      %s96 = sphi 0, %s96
      %s98 = sphi 0, %s96
      %s99 = sphi 0, %s98
      %s113 = sphi 0, %s99
      %s117 = sphi 0, %s117
      %s119 = sphi 0, %s117
      %s120 = sphi 0, %s119
      %s134 = sphi 0, %s120
      %s138 = sphi 0, %s138
      %s140 = sphi 0, %s138
      %s141 = sphi 0, %s140
      %s155 = sphi 0, %s141
      %s161 = sphi 0, %s163
      %s164 = sphi 0, %s161
      %s165 = sphi 0, %s164
      %s181 = sphi 0, %s165
    $region4: #{tpu_custom_call.1} parent=1 // loop_header_branch
      %18 = sbr.rel (%p16) target = $region8
    $region5: #{tpu_custom_call.1} parent=1 // loop_body
      %s20 = ssub.s32 %s15, 1
      %s21 = ssub.s32 %s15, 2
      %s22 = sadd.s32 %s15, 1
      %s23 = ssub.s32 %s15, %s22
      %p24 = scmp.eq.s32.totalorder %s23, 0
      %s26 = sadd.s32 %s25, 1
      %s27 = scalar_select %p24, %s25, %s26
      %p30 = pneg %p24
      %p31 = scmp.eq.s32.totalorder %s15, 3
      %p32 = por %p30, %p31
      %p33 = scmp.ne.s32.totalorder %s25, %s28
      %p34 = scmp.eq.s32.totalorder %s15, 0
      %p35 = por %p33, %p34
      %p36 = scmp.ne.s32.totalorder %s25, %s28
      %p37 = scmp.eq.s32.totalorder %s20, 3
      %p38 = por %p36, %p37
      %p39 = scmp.ne.s32.totalorder %s28, %s29
      %p40 = scmp.eq.s32.totalorder %s20, 0
      %p41 = por %p39, %p40
      %p42 = scmp.ne.s32.totalorder %s28, %s29
      %p43 = scmp.eq.s32.totalorder %s21, 3
      %p44 = por %p42, %p43
      %p46 = scmp.ne.s32.totalorder %s29, %s45
      %p47 = scmp.eq.s32.totalorder %s21, 0
      %p48 = por %p46, %p47
      %s49 = ssub.s32 %s15, %s22
      %p50 = scmp.eq.s32.totalorder %s49, 0
      %s52 = sadd.s32 %s51, 1
      %s53 = scalar_select %p50, %s51, %s52
      %p56 = pneg %p50
      %p57 = scmp.eq.s32.totalorder %s15, 3
      %p58 = por %p56, %p57
      %p59 = scmp.ne.s32.totalorder %s51, %s54
      %p60 = scmp.eq.s32.totalorder %s15, 0
      %p61 = por %p59, %p60
      %p62 = scmp.ne.s32.totalorder %s51, %s54
      %p63 = scmp.eq.s32.totalorder %s20, 3
      %p64 = por %p62, %p63
      %p65 = scmp.ne.s32.totalorder %s54, %s55
      %p66 = scmp.eq.s32.totalorder %s20, 0
      %p67 = por %p65, %p66
      %p68 = scmp.ne.s32.totalorder %s54, %s55
      %p69 = scmp.eq.s32.totalorder %s21, 3
      %p70 = por %p68, %p69
      %p72 = scmp.ne.s32.totalorder %s55, %s71
      %p73 = scmp.eq.s32.totalorder %s21, 0
      %p74 = por %p72, %p73
      %s76 = sadd.s32 %s75, 1
      %p79 = scmp.eq.s32.totalorder %s15, 3
      %p80 = scmp.ne.s32.totalorder %s75, %s77
      %p81 = scmp.eq.s32.totalorder %s15, 0
      %p82 = por %p80, %p81
      %p83 = scmp.ne.s32.totalorder %s75, %s77
      %p84 = scmp.eq.s32.totalorder %s20, 3
      %p85 = por %p83, %p84
      %p86 = scmp.ne.s32.totalorder %s77, %s78
      %p87 = scmp.eq.s32.totalorder %s20, 0
      %p88 = por %p86, %p87
      %p89 = scmp.ne.s32.totalorder %s77, %s78
      %p90 = scmp.eq.s32.totalorder %s21, 3
      %p91 = por %p89, %p90
      %p93 = scmp.ne.s32.totalorder %s78, %s92
      %p94 = scmp.eq.s32.totalorder %s21, 0
      %p95 = por %p93, %p94
      %s97 = sadd.s32 %s96, 1
      %p100 = scmp.eq.s32.totalorder %s15, 3
      %p101 = scmp.ne.s32.totalorder %s96, %s98
      %p102 = scmp.eq.s32.totalorder %s15, 0
      %p103 = por %p101, %p102
      %p104 = scmp.ne.s32.totalorder %s96, %s98
      %p105 = scmp.eq.s32.totalorder %s20, 3
      %p106 = por %p104, %p105
      %p107 = scmp.ne.s32.totalorder %s98, %s99
      %p108 = scmp.eq.s32.totalorder %s20, 0
      %p109 = por %p107, %p108
      %p110 = scmp.ne.s32.totalorder %s98, %s99
      %p111 = scmp.eq.s32.totalorder %s21, 3
      %p112 = por %p110, %p111
      %p114 = scmp.ne.s32.totalorder %s99, %s113
      %p115 = scmp.eq.s32.totalorder %s21, 0
      %p116 = por %p114, %p115
      %s118 = sadd.s32 %s117, 1
      %p121 = scmp.eq.s32.totalorder %s15, 3
      %p122 = scmp.ne.s32.totalorder %s117, %s119
      %p123 = scmp.eq.s32.totalorder %s15, 0
      %p124 = por %p122, %p123
      %p125 = scmp.ne.s32.totalorder %s117, %s119
      %p126 = scmp.eq.s32.totalorder %s20, 3
      %p127 = por %p125, %p126
      %p128 = scmp.ne.s32.totalorder %s119, %s120
      %p129 = scmp.eq.s32.totalorder %s20, 0
      %p130 = por %p128, %p129
      %p131 = scmp.ne.s32.totalorder %s119, %s120
      %p132 = scmp.eq.s32.totalorder %s21, 3
      %p133 = por %p131, %p132
      %p135 = scmp.ne.s32.totalorder %s120, %s134
      %p136 = scmp.eq.s32.totalorder %s21, 0
      %p137 = por %p135, %p136
      %s139 = sadd.s32 %s138, 1
      %p142 = scmp.eq.s32.totalorder %s15, 3
      %p143 = scmp.ne.s32.totalorder %s138, %s140
      %p144 = scmp.eq.s32.totalorder %s15, 0
      %p145 = por %p143, %p144
      %p146 = scmp.ne.s32.totalorder %s138, %s140
      %p147 = scmp.eq.s32.totalorder %s20, 3
      %p148 = por %p146, %p147
      %p149 = scmp.ne.s32.totalorder %s140, %s141
      %p150 = scmp.eq.s32.totalorder %s20, 0
      %p151 = por %p149, %p150
      %p152 = scmp.ne.s32.totalorder %s140, %s141
      %p153 = scmp.eq.s32.totalorder %s21, 3
      %p154 = por %p152, %p153
      %p156 = scmp.ne.s32.totalorder %s141, %s155
      %p157 = scmp.eq.s32.totalorder %s21, 0
      %p158 = por %p156, %p157
      %s159 = ssub.s32 %s15, %s22
      %p160 = scmp.eq.s32.totalorder %s159, 0
      %s162 = sadd.s32 %s161, 1
      %s163 = scalar_select %p160, %s161, %s162
      %p166 = pneg %p160
      %p167 = scmp.eq.s32.totalorder %s15, 3
      %p168 = por %p166, %p167
      %p169 = scmp.ne.s32.totalorder %s161, %s164
      %p170 = scmp.eq.s32.totalorder %s15, 0
      %p171 = por %p169, %p170
      %p172 = scmp.ne.s32.totalorder %s161, %s164
      %p173 = scmp.eq.s32.totalorder %s20, 3
      %p174 = por %p172, %p173
      %p175 = scmp.ne.s32.totalorder %s164, %s165
      %p176 = scmp.eq.s32.totalorder %s20, 0
      %p177 = por %p175, %p176
      %p178 = scmp.ne.s32.totalorder %s164, %s165
      %p179 = scmp.eq.s32.totalorder %s21, 3
      %p180 = por %p178, %p179
      %p182 = scmp.ne.s32.totalorder %s165, %s181
      %p183 = scmp.eq.s32.totalorder %s21, 0
      %p184 = por %p182, %p183
      %p185 = scmp.le.s32.totalorder 1, %s15
      %p186 = scmp.lt.s32.totalorder %s15, 5
      %p187 = pnand %p185, %p186
      %p188 = pneg %p187
      // Predicated region
      $region9: #{tpu_custom_call.1} parent=5 // pred_check
        _
      $region10: #{tpu_custom_call.1} parent=5 // pred_check_branch
        %190 = sbr.rel (%p187) target = $region12
      $region11: #{tpu_custom_call.1} parent=5 // pred_region
        %s191 = ssub.s32 %s15, 1
        // Predicated region
        $region13: #{tpu_custom_call.1} parent=11 // pred_check
          %p192 = pneg %p88
        $region14: #{tpu_custom_call.1} parent=11 // pred_check_branch
          %194 = sbr.rel (%p192) target = $region16
        $region15: #{tpu_custom_call.1} parent=11 // pred_region
          _
        $region16: #{tpu_custom_call.1} parent=11 // pred_fallthru
          _
        // Predicated region
        $region17: #{tpu_custom_call.1} parent=11 // pred_check
          %p195 = pneg %p109
        $region18: #{tpu_custom_call.1} parent=11 // pred_check_branch
          %197 = sbr.rel (%p195) target = $region20
        $region19: #{tpu_custom_call.1} parent=11 // pred_region
          _
        $region20: #{tpu_custom_call.1} parent=11 // pred_fallthru
          _
        // Predicated region
        $region21: #{tpu_custom_call.1} parent=11 // pred_check
          %p198 = pneg %p130
        $region22: #{tpu_custom_call.1} parent=11 // pred_check_branch
          %200 = sbr.rel (%p198) target = $region24
        $region23: #{tpu_custom_call.1} parent=11 // pred_region
          _
        $region24: #{tpu_custom_call.1} parent=11 // pred_fallthru
          _
        // Predicated region
        $region25: #{tpu_custom_call.1} parent=11 // pred_check
          %p201 = pneg %p151
        $region26: #{tpu_custom_call.1} parent=11 // pred_check_branch
          %203 = sbr.rel (%p201) target = $region28
        $region27: #{tpu_custom_call.1} parent=11 // pred_region
          _
        $region28: #{tpu_custom_call.1} parent=11 // pred_fallthru
          _
      $region12: #{tpu_custom_call.1} parent=5 // pred_fallthru
        _
      %p204 = scmp.lt.s32.totalorder %s15, 4
      // Predicated region
      $region29: #{tpu_custom_call.1} parent=5 // pred_check
        %p205 = pneg %p204
      $region30: #{tpu_custom_call.1} parent=5 // pred_check_branch
        %207 = sbr.rel (%p205) target = $region32
      $region31: #{tpu_custom_call.1} parent=5 // pred_region
        // Predicated region
        $region33: #{tpu_custom_call.1} parent=31 // pred_check
          %p208 = pneg %p35
        $region34: #{tpu_custom_call.1} parent=31 // pred_check_branch
          %210 = sbr.rel (%p208) target = $region36
        $region35: #{tpu_custom_call.1} parent=31 // pred_region
          %p211 = scmp.lt.s32.totalorder %s15, 3
          %s212 = scalar_select %p211, %s15, 3
          %s213 = smul.addr %s212, 8
          %s214 = smul.addr %s213, 4
          %s215 = scalar_lea.vmem %s0, %s214
        $region36: #{tpu_custom_call.1} parent=31 // pred_fallthru
          _
        // Predicated region
        $region37: #{tpu_custom_call.1} parent=31 // pred_check
          %p216 = pneg %p61
        $region38: #{tpu_custom_call.1} parent=31 // pred_check_branch
          %218 = sbr.rel (%p216) target = $region40
        $region39: #{tpu_custom_call.1} parent=31 // pred_region
          %p219 = scmp.lt.s32.totalorder %s15, 3
          %s220 = scalar_select %p219, %s15, 3
          %s221 = smul.addr %s220, 8
          %s222 = smul.addr %s221, 4
          %s223 = scalar_lea.vmem %s1, %s222
        $region40: #{tpu_custom_call.1} parent=31 // pred_fallthru
          _
      $region32: #{tpu_custom_call.1} parent=5 // pred_fallthru
        _
      %p224 = scmp.le.s32.totalorder 1, %s15
      %p225 = scmp.lt.s32.totalorder %s15, 5
      %p226 = pnand %p224, %p225
      %p227 = pneg %p226
      // Predicated region
      $region41: #{tpu_custom_call.1} parent=5 // pred_check
        _
      $region42: #{tpu_custom_call.1} parent=5 // pred_check_branch
        %229 = sbr.rel (%p226) target = $region44
      $region43: #{tpu_custom_call.1} parent=5 // pred_region
        %s230 = ssub.s32 %s15, 1
        %p231 = scmp.lt.s32.totalorder %s20, 3
        %s232 = scalar_select %p231, %s20, 3
        %s233 = smul.addr %s232, 8
        %s234 = smul.addr %s233, 4
        %s235 = scalar_lea.vmem %s0, %s234
        %p236 = pneg %p41
        %p237 = pneg %p38
        %p238 = scmp.lt.s32.totalorder %s20, 3
        %s239 = scalar_select %p238, %s20, 3
        %s240 = smul.addr %s239, 8
        %s241 = smul.addr %s240, 4
        %s242 = scalar_lea.vmem %s1, %s241
        %p243 = pneg %p67
        %p244 = pneg %p64
        %p245 = pneg %p88
        %p246 = pneg %p85
        %p247 = pneg %p109
        %p248 = pneg %p106
        %p249 = pneg %p130
        %p250 = pneg %p127
        %p251 = pneg %p151
        %p252 = pneg %p148
        %p253 = pneg %p177
        %p254 = pneg %p174
        %s255 = sand.u32 %s164, 1
        %s256 = scalar_lea.sflag [#allocation3], %s255
        %s257 = sand.u32 %s164, 1
        %s258 = smul.addr %s257, 64
        %s259 = scalar_lea.vmem [#allocation2], %s258
        %p260 = scmp.lt.s32.totalorder %s20, 3
        %s261 = scalar_select %p260, %s20, 3
        %s262 = smul.addr %s261, 8
        %s263 = smul.addr %s262, 4
        %s264 = scalar_lea.vmem %s0, %s263
        %p265 = scmp.lt.s32.totalorder %s20, 3
        %s266 = scalar_select %p265, %s20, 3
        %s267 = smul.addr %s266, 8
        %s268 = smul.addr %s267, 4
        %s269 = scalar_lea.vmem %s1, %s268
        %v271 = vld [vmem:[%s264] sm:$0xf]
        %v272 = vld [vmem:[%s264 + $0x4] sm:$0xf]
        %v273 = vld [vmem:[%s264 + $0x8] sm:$0xf]
        %v274 = vld [vmem:[%s264 + $0xc] sm:$0xf]
        %v275 = vld [vmem:[%s264 + $0x10] sm:$0xf]
        %v276 = vld [vmem:[%s264 + $0x14] sm:$0xf]
        %v277 = vld [vmem:[%s264 + $0x18] sm:$0xf]
        %v278 = vld [vmem:[%s264 + $0x1c] sm:$0xf]
        %v279 = vld [vmem:[%s269] sm:$0xf]
        %v280 = vld [vmem:[%s269 + $0x4] sm:$0xf]
        %v281 = vld [vmem:[%s269 + $0x8] sm:$0xf]
        %v282 = vld [vmem:[%s269 + $0xc] sm:$0xf]
        %v283 = vld [vmem:[%s269 + $0x10] sm:$0xf]
        %v284 = vld [vmem:[%s269 + $0x14] sm:$0xf]
        %v285 = vld [vmem:[%s269 + $0x18] sm:$0xf]
        %v286 = vld [vmem:[%s269 + $0x1c] sm:$0xf]
        %v287 = vld [vmem:[%s2] sm:$0xf]
        %v288 = vld [vmem:[%s2 + $0x4] sm:$0xf]
        %v289 = vld [vmem:[%s2 + $0x8] sm:$0xf]
        %v290 = vld [vmem:[%s2 + $0xc] sm:$0xf]
        %v299 = vunpack.c.l.b16 %v271
        %v300 = vunpack.c.l.b16 %v272
        %v301 = vunpack.c.l.b16 %v273
        %v302 = vunpack.c.l.b16 %v274
        %v303 = vunpack.c.l.b16 %v275
        %v304 = vunpack.c.l.b16 %v276
        %v305 = vunpack.c.l.b16 %v277
        %v306 = vunpack.c.l.b16 %v278
        %v307 = vpack.c.b16 %v300, %v299
        %v308 = vpack.c.b16 %v302, %v301
        %v309 = vpack.c.b16 %v304, %v303
        %v310 = vpack.c.b16 %v306, %v305
        %v315 = vunpack.c.l.b16 %v287
        %v316 = vunpack.c.l.b16 %v288
        %v317 = vunpack.c.l.b16 %v289
        %v318 = vunpack.c.l.b16 %v290
        %v319 = vpack.c.b16 %v316, %v315
        %v320 = vpack.c.b16 %v318, %v317
        %vm323 = vcmask 261120
        %v325 = vsel %vm323, %v307, 0
        %v328 = vsel %vm323, %v308, 0
        %v331 = vsel %vm323, %v309, 0
        %v334 = vsel %vm323, %v310, 0
        %336 = vmatprep.subr.bf16.mxu0 0
        %337 = vmatpush1.bf16.msra.mxu0 %v319
        %338 = vmatprep.subr.bf16.mxu0 0
        %339 = vmatpush1.bf16.msra.mxu0 %v320
        %340 = vmatprep.subr.bf16.mxu0 0
        %341 = vmatpush1.bf16.msra.mxu0 0
        %342 = vmatprep.subr.bf16.mxu0 0
        %343 = vmatpush1.bf16.msra.mxu0 0
        %344 = vmatprep.subr.bf16.mxu0 0
        %345 = vmatpush1.bf16.msra.mxu0 0
        %346 = vmatprep.subr.bf16.mxu0 0
        %347 = vmatpush1.bf16.msra.mxu0 0
        %348 = vmatprep.subr.bf16.mxu0 0
        %349 = vmatpush1.bf16.msra.mxu0 0
        %350 = vmatprep.subr.bf16.mxu0 0
        %351 = vmatpush1.bf16.msra.mxu0 0
        %352 = vmatprep.subr.bf16.mxu0 0
        %353 = vmatpush1.bf16.msra.mxu0 0
        %354 = vmatprep.subr.bf16.mxu0 0
        %355 = vmatpush1.bf16.msra.mxu0 0
        %356 = vmatprep.subr.bf16.mxu0 0
        %357 = vmatpush1.bf16.msra.mxu0 0
        %358 = vmatprep.subr.bf16.mxu0 0
        %359 = vmatpush1.bf16.msra.mxu0 0
        %360 = vmatprep.subr.bf16.mxu0 0
        %361 = vmatpush1.bf16.msra.mxu0 0
        %362 = vmatprep.subr.bf16.mxu0 0
        %363 = vmatpush1.bf16.msra.mxu0 0
        %364 = vmatprep.subr.bf16.mxu0 0
        %365 = vmatpush1.bf16.msra.mxu0 0
        %366 = vmatprep.subr.bf16.mxu0 0
        %367 = vmatpush1.bf16.msra.mxu0 0
        %368 = vmatprep.mubr.bf16.mxu0 0
        %369 = vmatmul.mubr.bf16.gmra.mrb[0].mxu0 %v325
        %v370 = vpop.f32.mrb[0].mxu0
        %v371 = vadd.f32 0.0, %v370
        %v372 = vpop.f32.mrb[0].mxu0
        %v373 = vpop.f32.mrb[0].mxu0
        %v374 = vadd.f32 0.0, %v373
        %v375 = vpop.f32.mrb[0].mxu0
        %376 = vmatprep.mubr.bf16.mxu0 0
        %377 = vmatmul.mubr.bf16.gmra.mrb[0].mxu0 %v328
        %v378 = vpop.f32.mrb[0].mxu0
        %v379 = vadd.f32 0.0, %v378
        %v380 = vpop.f32.mrb[0].mxu0
        %v381 = vpop.f32.mrb[0].mxu0
        %v382 = vadd.f32 0.0, %v381
        %v383 = vpop.f32.mrb[0].mxu0
        %384 = vmatprep.mubr.bf16.mxu0 0
        %385 = vmatmul.mubr.bf16.gmra.mrb[0].mxu0 %v331
        %v386 = vpop.f32.mrb[0].mxu0
        %v387 = vadd.f32 0.0, %v386
        %v388 = vpop.f32.mrb[0].mxu0
        %v389 = vpop.f32.mrb[0].mxu0
        %v390 = vadd.f32 0.0, %v389
        %v391 = vpop.f32.mrb[0].mxu0
        %392 = vmatprep.mubr.bf16.mxu0 0
        %393 = vmatmul.mubr.bf16.gmra.mrb[0].mxu0 %v334
        %v394 = vpop.f32.mrb[0].mxu0
        %v395 = vadd.f32 0.0, %v394
        %v396 = vpop.f32.mrb[0].mxu0
        %v397 = vpop.f32.mrb[0].mxu0
        %v398 = vadd.f32 0.0, %v397
        %v399 = vpop.f32.mrb[0].mxu0
        %400 = vdwg.mxu0
        %v401 = vpack.c.bf16 %v374, %v371
        %v402 = vpack.c.bf16 %v382, %v379
        %v403 = vpack.c.bf16 %v390, %v387
        %v404 = vpack.c.bf16 %v398, %v395
        %v405 = vld [vmem:[%s3] sm:$0x1]
        %v407 = vlaneseq
        %v408 = vshrl.u32 %v407, 7
        %v409 = vsub.s32 0, %v408
        %v410 = vrot.slane %v405, %v409
        %v420 = vunpack.c.l.b16 %v279
        %v421 = vunpack.c.l.b16 %v280
        %v422 = vunpack.c.l.b16 %v281
        %v423 = vunpack.c.l.b16 %v282
        %v424 = vunpack.c.l.b16 %v283
        %v425 = vunpack.c.l.b16 %v284
        %v426 = vunpack.c.l.b16 %v285
        %v427 = vunpack.c.l.b16 %v286
        %v428 = vpack.c.b16 %v421, %v420
        %v429 = vpack.c.b16 %v423, %v422
        %v430 = vpack.c.b16 %v425, %v424
        %v431 = vpack.c.b16 %v427, %v426
        %vm432 = vcmask 523264
        %v434 = vsel %vm432, %v428, 0
        %v437 = vsel %vm432, %v429, 0
        %v440 = vsel %vm432, %v430, 0
        %v443 = vsel %vm432, %v431, 0
        %445 = vmatprep.subr.bf16.mxu0 0
        %446 = vmatpush1.bf16.msra.mxu0 %v401
        %447 = vmatprep.subr.bf16.mxu0 0
        %448 = vmatpush1.bf16.msra.mxu0 %v402
        %449 = vmatprep.subr.bf16.mxu0 0
        %450 = vmatpush1.bf16.msra.mxu0 %v403
        %451 = vmatprep.subr.bf16.mxu0 0
        %452 = vmatpush1.bf16.msra.mxu0 %v404
        %453 = vmatprep.subr.bf16.mxu0 0
        %454 = vmatpush1.bf16.msra.mxu0 0
        %455 = vmatprep.subr.bf16.mxu0 0
        %456 = vmatpush1.bf16.msra.mxu0 0
        %457 = vmatprep.subr.bf16.mxu0 0
        %458 = vmatpush1.bf16.msra.mxu0 0
        %459 = vmatprep.subr.bf16.mxu0 0
        %460 = vmatpush1.bf16.msra.mxu0 0
        %461 = vmatprep.subr.bf16.mxu0 0
        %462 = vmatpush1.bf16.msra.mxu0 0
        %463 = vmatprep.subr.bf16.mxu0 0
        %464 = vmatpush1.bf16.msra.mxu0 0
        %465 = vmatprep.subr.bf16.mxu0 0
        %466 = vmatpush1.bf16.msra.mxu0 0
        %467 = vmatprep.subr.bf16.mxu0 0
        %468 = vmatpush1.bf16.msra.mxu0 0
        %469 = vmatprep.subr.bf16.mxu0 0
        %470 = vmatpush1.bf16.msra.mxu0 0
        %471 = vmatprep.subr.bf16.mxu0 0
        %472 = vmatpush1.bf16.msra.mxu0 0
        %473 = vmatprep.subr.bf16.mxu0 0
        %474 = vmatpush1.bf16.msra.mxu0 0
        %475 = vmatprep.subr.bf16.mxu0 0
        %476 = vmatpush1.bf16.msra.mxu0 0
        %477 = vmatprep.mubr.bf16.mxu0 0
        %478 = vmatmul.mubr.bf16.gmra.mrb[0].mxu0 %v434
        %v479 = vpop.f32.mrb[0].mxu0
        %v480 = vadd.f32 %v410, %v479
        %v481 = vpop.f32.mrb[0].mxu0
        %v482 = vpop.f32.mrb[0].mxu0
        %v483 = vadd.f32 %v410, %v482
        %v484 = vpop.f32.mrb[0].mxu0
        %485 = vmatprep.mubr.bf16.mxu0 0
        %486 = vmatmul.mubr.bf16.gmra.mrb[0].mxu0 %v437
        %v487 = vpop.f32.mrb[0].mxu0
        %v488 = vadd.f32 %v410, %v487
        %v489 = vpop.f32.mrb[0].mxu0
        %v490 = vpop.f32.mrb[0].mxu0
        %v491 = vadd.f32 %v410, %v490
        %v492 = vpop.f32.mrb[0].mxu0
        %493 = vmatprep.mubr.bf16.mxu0 0
        %494 = vmatmul.mubr.bf16.gmra.mrb[0].mxu0 %v440
        %v495 = vpop.f32.mrb[0].mxu0
        %v496 = vadd.f32 %v410, %v495
        %v497 = vpop.f32.mrb[0].mxu0
        %v498 = vpop.f32.mrb[0].mxu0
        %v499 = vadd.f32 %v410, %v498
        %v500 = vpop.f32.mrb[0].mxu0
        %501 = vmatprep.mubr.bf16.mxu0 0
        %502 = vmatmul.mubr.bf16.gmra.mrb[0].mxu0 %v443
        %v503 = vpop.f32.mrb[0].mxu0
        %v504 = vadd.f32 %v410, %v503
        %v505 = vpop.f32.mrb[0].mxu0
        %v506 = vpop.f32.mrb[0].mxu0
        %v507 = vadd.f32 %v410, %v506
        %v508 = vpop.f32.mrb[0].mxu0
        %509 = vdwg.mxu0
        %v510 = vmax.f32 %v480, 0.0
        %v511 = vmax.f32 %v483, 0.0
        %v512 = vmax.f32 %v488, 0.0
        %v513 = vmax.f32 %v491, 0.0
        %v514 = vmax.f32 %v496, 0.0
        %v515 = vmax.f32 %v499, 0.0
        %v516 = vmax.f32 %v504, 0.0
        %v517 = vmax.f32 %v507, 0.0
        %v518 = vpack.c.bf16 %v511, %v510
        %v519 = vpack.c.bf16 %v513, %v512
        %v520 = vpack.c.bf16 %v515, %v514
        %v521 = vpack.c.bf16 %v517, %v516
        %v522 = vld [vmem:[%s4] sm:$0xf]
        %v523 = vld [vmem:[%s4 + $0x4] sm:$0xf]
        %v526 = vunpack.c.l.b16 %v522
        %v527 = vunpack.c.l.b16 %v523
        %v528 = vpack.c.b16 %v527, %v526
        %vm530 = vcmask 130048
        %v532 = vsel %vm530, %v518, 0
        %v535 = vsel %vm530, %v519, 0
        %v538 = vsel %vm530, %v520, 0
        %v541 = vsel %vm530, %v521, 0
        %543 = vmatprep.subr.bf16.mxu0 0
        %544 = vmatpush1.bf16.msra.mxu0 %v528
        %545 = vmatprep.subr.bf16.mxu0 0
        %546 = vmatpush1.bf16.msra.mxu0 0
        %547 = vmatprep.subr.bf16.mxu0 0
        %548 = vmatpush1.bf16.msra.mxu0 0
        %549 = vmatprep.subr.bf16.mxu0 0
        %550 = vmatpush1.bf16.msra.mxu0 0
        %551 = vmatprep.subr.bf16.mxu0 0
        %552 = vmatpush1.bf16.msra.mxu0 0
        %553 = vmatprep.subr.bf16.mxu0 0
        %554 = vmatpush1.bf16.msra.mxu0 0
        %555 = vmatprep.subr.bf16.mxu0 0
        %556 = vmatpush1.bf16.msra.mxu0 0
        %557 = vmatprep.subr.bf16.mxu0 0
        %558 = vmatpush1.bf16.msra.mxu0 0
        %559 = vmatprep.subr.bf16.mxu0 0
        %560 = vmatpush1.bf16.msra.mxu0 0
        %561 = vmatprep.subr.bf16.mxu0 0
        %562 = vmatpush1.bf16.msra.mxu0 0
        %563 = vmatprep.subr.bf16.mxu0 0
        %564 = vmatpush1.bf16.msra.mxu0 0
        %565 = vmatprep.subr.bf16.mxu0 0
        %566 = vmatpush1.bf16.msra.mxu0 0
        %567 = vmatprep.subr.bf16.mxu0 0
        %568 = vmatpush1.bf16.msra.mxu0 0
        %569 = vmatprep.subr.bf16.mxu0 0
        %570 = vmatpush1.bf16.msra.mxu0 0
        %571 = vmatprep.subr.bf16.mxu0 0
        %572 = vmatpush1.bf16.msra.mxu0 0
        %573 = vmatprep.subr.bf16.mxu0 0
        %574 = vmatpush1.bf16.msra.mxu0 0
        %575 = vmatprep.mubr.bf16.mxu0 0
        %576 = vmatmul.mubr.bf16.gmra.mrb[0].mxu0 %v532
        %v577 = vpop.f32.mrb[0].mxu0
        %v578 = vadd.f32 0.0, %v577
        %v579 = vpop.f32.mrb[0].mxu0
        %v580 = vpop.f32.mrb[0].mxu0
        %v581 = vadd.f32 0.0, %v580
        %v582 = vpop.f32.mrb[0].mxu0
        %583 = vmatprep.mubr.bf16.mxu0 0
        %584 = vmatmul.mubr.bf16.gmra.mrb[0].mxu0 %v535
        %v585 = vpop.f32.mrb[0].mxu0
        %v586 = vadd.f32 0.0, %v585
        %v587 = vpop.f32.mrb[0].mxu0
        %v588 = vpop.f32.mrb[0].mxu0
        %v589 = vadd.f32 0.0, %v588
        %v590 = vpop.f32.mrb[0].mxu0
        %591 = vmatprep.mubr.bf16.mxu0 0
        %592 = vmatmul.mubr.bf16.gmra.mrb[0].mxu0 %v538
        %v593 = vpop.f32.mrb[0].mxu0
        %v594 = vadd.f32 0.0, %v593
        %v595 = vpop.f32.mrb[0].mxu0
        %v596 = vpop.f32.mrb[0].mxu0
        %v597 = vadd.f32 0.0, %v596
        %v598 = vpop.f32.mrb[0].mxu0
        %599 = vmatprep.mubr.bf16.mxu0 0
        %600 = vmatmul.mubr.bf16.gmra.mrb[0].mxu0 %v541
        %v601 = vpop.f32.mrb[0].mxu0
        %v602 = vadd.f32 0.0, %v601
        %v603 = vpop.f32.mrb[0].mxu0
        %v604 = vpop.f32.mrb[0].mxu0
        %v605 = vadd.f32 0.0, %v604
        %v606 = vpop.f32.mrb[0].mxu0
        %607 = vdwg.mxu0
        %v608 = vpack.c.bf16 %v581, %v578
        %v609 = vpack.c.bf16 %v589, %v586
        %v610 = vpack.c.bf16 %v597, %v594
        %v611 = vpack.c.bf16 %v605, %v602
        %v612 = vld [vmem:[%s5] sm:$0x1]
        %v614 = vlaneseq
        %v615 = vshrl.u32 %v614, 7
        %v616 = vsub.s32 0, %v615
        %v617 = vrot.slane %v612, %v616
        %619 = vmatprep.subr.bf16.mxu0 0
        %620 = vmatpush1.bf16.msra.mxu0 %v608
        %621 = vmatprep.subr.bf16.mxu0 0
        %622 = vmatpush1.bf16.msra.mxu0 %v609
        %623 = vmatprep.subr.bf16.mxu0 0
        %624 = vmatpush1.bf16.msra.mxu0 %v610
        %625 = vmatprep.subr.bf16.mxu0 0
        %626 = vmatpush1.bf16.msra.mxu0 %v611
        %627 = vmatprep.subr.bf16.mxu0 0
        %628 = vmatpush1.bf16.msra.mxu0 0
        %629 = vmatprep.subr.bf16.mxu0 0
        %630 = vmatpush1.bf16.msra.mxu0 0
        %631 = vmatprep.subr.bf16.mxu0 0
        %632 = vmatpush1.bf16.msra.mxu0 0
        %633 = vmatprep.subr.bf16.mxu0 0
        %634 = vmatpush1.bf16.msra.mxu0 0
        %635 = vmatprep.subr.bf16.mxu0 0
        %636 = vmatpush1.bf16.msra.mxu0 0
        %637 = vmatprep.subr.bf16.mxu0 0
        %638 = vmatpush1.bf16.msra.mxu0 0
        %639 = vmatprep.subr.bf16.mxu0 0
        %640 = vmatpush1.bf16.msra.mxu0 0
        %641 = vmatprep.subr.bf16.mxu0 0
        %642 = vmatpush1.bf16.msra.mxu0 0
        %643 = vmatprep.subr.bf16.mxu0 0
        %644 = vmatpush1.bf16.msra.mxu0 0
        %645 = vmatprep.subr.bf16.mxu0 0
        %646 = vmatpush1.bf16.msra.mxu0 0
        %647 = vmatprep.subr.bf16.mxu0 0
        %648 = vmatpush1.bf16.msra.mxu0 0
        %649 = vmatprep.subr.bf16.mxu0 0
        %650 = vmatpush1.bf16.msra.mxu0 0
        %651 = vmatprep.mubr.bf16.mxu0 0
        %652 = vmatmul.mubr.bf16.gmra.mrb[0].mxu0 %v434
        %v653 = vpop.f32.mrb[0].mxu0
        %v654 = vadd.f32 %v617, %v653
        %v655 = vpop.f32.mrb[0].mxu0
        %v656 = vpop.f32.mrb[0].mxu0
        %v657 = vadd.f32 %v617, %v656
        %v658 = vpop.f32.mrb[0].mxu0
        %659 = vmatprep.mubr.bf16.mxu0 0
        %660 = vmatmul.mubr.bf16.gmra.mrb[0].mxu0 %v437
        %v661 = vpop.f32.mrb[0].mxu0
        %v662 = vadd.f32 %v617, %v661
        %v663 = vpop.f32.mrb[0].mxu0
        %v664 = vpop.f32.mrb[0].mxu0
        %v665 = vadd.f32 %v617, %v664
        %v666 = vpop.f32.mrb[0].mxu0
        %667 = vmatprep.mubr.bf16.mxu0 0
        %668 = vmatmul.mubr.bf16.gmra.mrb[0].mxu0 %v440
        %v669 = vpop.f32.mrb[0].mxu0
        %v670 = vadd.f32 %v617, %v669
        %v671 = vpop.f32.mrb[0].mxu0
        %v672 = vpop.f32.mrb[0].mxu0
        %v673 = vadd.f32 %v617, %v672
        %v674 = vpop.f32.mrb[0].mxu0
        %675 = vmatprep.mubr.bf16.mxu0 0
        %676 = vmatmul.mubr.bf16.gmra.mrb[0].mxu0 %v443
        %v677 = vpop.f32.mrb[0].mxu0
        %v678 = vadd.f32 %v617, %v677
        %v679 = vpop.f32.mrb[0].mxu0
        %v680 = vpop.f32.mrb[0].mxu0
        %v681 = vadd.f32 %v617, %v680
        %v682 = vpop.f32.mrb[0].mxu0
        %683 = vdwg.mxu0
        %684 = vmax.xlane.f32.xlu0 %v654
        %v685 = vpop.xlane.xlu0 %684
        %686 = vmax.xlane.f32.xlu0 %v657
        %v687 = vpop.xlane.xlu0 %686
        %688 = vmax.xlane.f32.xlu0 %v662
        %v689 = vpop.xlane.xlu0 %688
        %690 = vmax.xlane.f32.xlu0 %v665
        %v691 = vpop.xlane.xlu0 %690
        %692 = vmax.xlane.f32.xlu0 %v670
        %v693 = vpop.xlane.xlu0 %692
        %694 = vmax.xlane.f32.xlu0 %v673
        %v695 = vpop.xlane.xlu0 %694
        %696 = vmax.xlane.f32.xlu0 %v678
        %v697 = vpop.xlane.xlu0 %696
        %698 = vmax.xlane.f32.xlu0 %v681
        %v699 = vpop.xlane.xlu0 %698
        %v700 = vsub.f32 %v654, %v685
        %v701 = vsub.f32 %v657, %v687
        %v702 = vsub.f32 %v662, %v689
        %v703 = vsub.f32 %v665, %v691
        %v704 = vsub.f32 %v670, %v693
        %v705 = vsub.f32 %v673, %v695
        %v706 = vsub.f32 %v678, %v697
        %v707 = vsub.f32 %v681, %v699
        %v708 = vmul.f32 %v700, 1.442695
        %v709 = vpow.pop %v708
        %v710 = vmul.f32 %v701, 1.442695
        %v711 = vpow.pop %v710
        %v712 = vmul.f32 %v702, 1.442695
        %v713 = vpow.pop %v712
        %v714 = vmul.f32 %v703, 1.442695
        %v715 = vpow.pop %v714
        %v716 = vmul.f32 %v704, 1.442695
        %v717 = vpow.pop %v716
        %v718 = vmul.f32 %v705, 1.442695
        %v719 = vpow.pop %v718
        %v720 = vmul.f32 %v706, 1.442695
        %v721 = vpow.pop %v720
        %v722 = vmul.f32 %v707, 1.442695
        %v723 = vpow.pop %v722
        %724 = vadd.xlane.f32.xlu0 %v709
        %v725 = vpop.xlane.xlu0 %724
        %726 = vadd.xlane.f32.xlu0 %v711
        %v727 = vpop.xlane.xlu0 %726
        %728 = vadd.xlane.f32.xlu0 %v713
        %v729 = vpop.xlane.xlu0 %728
        %730 = vadd.xlane.f32.xlu0 %v715
        %v731 = vpop.xlane.xlu0 %730
        %732 = vadd.xlane.f32.xlu0 %v717
        %v733 = vpop.xlane.xlu0 %732
        %734 = vadd.xlane.f32.xlu0 %v719
        %v735 = vpop.xlane.xlu0 %734
        %736 = vadd.xlane.f32.xlu0 %v721
        %v737 = vpop.xlane.xlu0 %736
        %738 = vadd.xlane.f32.xlu0 %v723
        %v739 = vpop.xlane.xlu0 %738
        %v740 = vlog2.pop %v725
        %v741 = vmul.f32 %v740, 0.6931472
        %v742 = vlog2.pop %v727
        %v743 = vmul.f32 %v742, 0.6931472
        %v744 = vlog2.pop %v729
        %v745 = vmul.f32 %v744, 0.6931472
        %v746 = vlog2.pop %v731
        %v747 = vmul.f32 %v746, 0.6931472
        %v748 = vlog2.pop %v733
        %v749 = vmul.f32 %v748, 0.6931472
        %v750 = vlog2.pop %v735
        %v751 = vmul.f32 %v750, 0.6931472
        %v752 = vlog2.pop %v737
        %v753 = vmul.f32 %v752, 0.6931472
        %v754 = vlog2.pop %v739
        %v755 = vmul.f32 %v754, 0.6931472
        %v756 = vadd.f32 %v685, %v741
        %v757 = vadd.f32 %v687, %v743
        %v758 = vadd.f32 %v689, %v745
        %v759 = vadd.f32 %v691, %v747
        %v760 = vadd.f32 %v693, %v749
        %v761 = vadd.f32 %v695, %v751
        %v762 = vadd.f32 %v697, %v753
        %v763 = vadd.f32 %v699, %v755
        %v764 = vsub.f32 %v654, %v756
        %v765 = vsub.f32 %v657, %v757
        %v766 = vsub.f32 %v662, %v758
        %v767 = vsub.f32 %v665, %v759
        %v768 = vsub.f32 %v670, %v760
        %v769 = vsub.f32 %v673, %v761
        %v770 = vsub.f32 %v678, %v762
        %v771 = vsub.f32 %v681, %v763
        %772 = vst [vmem:[%s259] sm:$0xff] %v764
        %773 = vst [vmem:[%s259 + $0x8] sm:$0xff] %v765
        %774 = vst [vmem:[%s259 + $0x10] sm:$0xff] %v766
        %775 = vst [vmem:[%s259 + $0x18] sm:$0xff] %v767
        %776 = vst [vmem:[%s259 + $0x20] sm:$0xff] %v768
        %777 = vst [vmem:[%s259 + $0x28] sm:$0xff] %v769
        %778 = vst [vmem:[%s259 + $0x30] sm:$0xff] %v770
        %779 = vst [vmem:[%s259 + $0x38] sm:$0xff] %v771
        %s780 = sand.u32 %s164, 1
        %s781 = scalar_lea.sflag [#allocation3], %s780
        %s782 = sand.u32 %s164, 1
        %s783 = smul.addr %s782, 64
        %s784 = scalar_lea.vmem [#allocation2], %s783
        // Predicated region
        $region45: #{tpu_custom_call.1} parent=43 // pred_check
          %p785 = pneg %p174
        $region46: #{tpu_custom_call.1} parent=43 // pred_check_branch
          %787 = sbr.rel (%p785) target = $region48
        $region47: #{tpu_custom_call.1} parent=43 // pred_region
          %s789 = ssub.s32 1024, 1024
          %790 = vsyncadd %s781, %s789
          %s791 = smul.addr %s20, 8
          %s792 = smul.addr %s791, 128
          %s793 = scalar_lea.hbm %s6, %s792
          %s794 = sshll.u32 %s784, 4
          %s795 = int_to_ptr.vmem [resolvable:$true] %s794
          %800 = dma.vmem_to_hbm [thread:$0]  %s795, 1024, %s793, %s781, 128, 128, 8
        $region48: #{tpu_custom_call.1} parent=43 // pred_fallthru
          _
      $region44: #{tpu_custom_call.1} parent=5 // pred_fallthru
        _
      %p801 = scmp.le.s32.totalorder 2, %s15
      // Predicated region
      $region49: #{tpu_custom_call.1} parent=5 // pred_check
        %p802 = pneg %p801
      $region50: #{tpu_custom_call.1} parent=5 // pred_check_branch
        %804 = sbr.rel (%p802) target = $region52
      $region51: #{tpu_custom_call.1} parent=5 // pred_region
        %s805 = ssub.s32 %s15, 2
        // Predicated region
        $region53: #{tpu_custom_call.1} parent=51 // pred_check
          %p806 = pneg %p180
        $region54: #{tpu_custom_call.1} parent=51 // pred_check_branch
          %808 = sbr.rel (%p806) target = $region56
        $region55: #{tpu_custom_call.1} parent=51 // pred_region
          %s809 = sand.u32 %s165, 1
          %s810 = scalar_lea.sflag [#allocation3], %s809
          %s811 = sand.u32 %s165, 1
          %s812 = smul.addr %s811, 64
          %s813 = scalar_lea.vmem [#allocation2], %s812
          %814 = dma.done %s810, 1024
        $region56: #{tpu_custom_call.1} parent=51 // pred_fallthru
          _
      $region52: #{tpu_custom_call.1} parent=5 // pred_fallthru
        _
    $region6: #{tpu_custom_call.1} parent=1 // loop_footer
      %s19 = sadd.s32 1, %s15
    $region7: #{tpu_custom_call.1} parent=1 // loop_footer_branch
      %14 = sbr.rel target = $region3
    $region8: #{tpu_custom_call.1} parent=1 // loop_exit
      _
    %815 = vsyncpa [#allocation3], 1
    %s816 = scalar_lea.sflag [#allocation3], 1
    %817 = vsyncpa %s816, 1

</llo_original>
